<compile_context>
chip_gen: v7x
topology: tpu7x:2x2x1
jax: 0.10.0
libtpu: 0.0.40
codegen_flags: <defaults>
</compile_context>

<pallas_src>
import functools

import jax
import jax.numpy as jnp
from jax.experimental import pallas as pl
from jax.experimental.pallas import tpu as pltpu


def _layernorm_kernel_plain(alpha_ref, bias_ref, x_ref, o_ref, *, eps, d):
    """x_ref/o_ref: (block_rows, d) VMEM tiles; alpha/bias: (1,) f32 in SMEM."""
    x = x_ref[...].astype(jnp.float32)
    alpha = alpha_ref[0]
    beta = bias_ref[0]

    inv_d = 1.0 / d
    inv_dm1 = 1.0 / max(d - 1, 1)   # torch.std is unbiased (ddof=1)

    # Two-pass (centered) variance: row is resident in VMEM, so the second
    # pass is pure VPU work hidden under the HBM DMA.
    mean = jnp.sum(x, axis=-1, keepdims=True) * inv_d
    xc = x - mean
    var = jnp.sum(xc * xc, axis=-1, keepdims=True) * inv_dm1
    std = jnp.sqrt(jnp.maximum(var, 0.0))
    denom = std + eps
    # EUP reciprocal (approx) + one Newton step -> f32 accuracy, no divide.
    inv = pl.reciprocal(denom, approx=True)
    inv = inv * (2.0 - denom * inv)
    scale = alpha * inv
    o_ref[...] = (xc * scale + beta).astype(o_ref.dtype)


def _layernorm_kernel_grouped(alpha_ref, bias_ref, x_ref, m_ref, o_ref, *, eps, d):
    """Small-D fold path: each VMEM row packs groups = d2 // d logical rows.

    m_ref is a static (d2, d2) 0/1 block-diagonal matrix.  x @ M gives every
    lane the sum over its own d-wide segment (already broadcast to full lane
    width), so there is no per-group slicing, XLU reduce, or concatenate.
    """
    x = x_ref[...].astype(jnp.float32)
    m = m_ref[...]
    alpha = alpha_ref[0]
    beta = bias_ref[0]

    inv_d = 1.0 / d
    inv_dm1 = 1.0 / max(d - 1, 1)   # for d == 1 -> xc == 0 and out == bias

    hi = jax.lax.Precision.HIGHEST
    # Per-segment sums broadcast to full width via the (otherwise idle) MXU.
    s = jnp.dot(x, m, precision=hi, preferred_element_type=jnp.float32)
    mean = s * inv_d
    xc = x - mean
    # Two-pass variance; squaring stays in f32 before the matmul.
    ssc = jnp.dot(xc * xc, m, precision=hi, preferred_element_type=jnp.float32)
    var = ssc * inv_dm1
    std = jnp.sqrt(jnp.maximum(var, 0.0))
    denom = std + eps
    inv = pl.reciprocal(denom, approx=True)
    inv = inv * (2.0 - denom * inv)
    scale = alpha * inv
    o_ref[...] = (xc * scale + beta).astype(o_ref.dtype)


def _num_tensorcores():
    """Best-effort TensorCores-per-chip (v5e/v6e: 1; v7x/v4/v5p: 2)."""
    try:
        kind = str(getattr(jax.devices()[0], "device_kind", "")).lower()
    except Exception:
        return 1
    if any(s in kind for s in ("v5 lite", "v5e", "v6 lite", "v6e")):
        return 1
    if any(s in kind for s in ("v7", "7x", "v4", "v5p", "v5")):
        return 2
    return 1


def layer_normalization(x, alpha, bias, eps=1e-6, block_rows=None):
    """Pallas TPU LayerNormalization.  x: (..., D); alpha, bias: shape (1,)."""
    orig_shape = x.shape
    d = int(orig_shape[-1])
    rows = 1
    for s in orig_shape[:-1]:
        rows *= int(s)
    rows = max(rows, 1)

    # ---- lane-dense small-D fold: pack `groups` rows into one 128-wide row --
    groups = 1
    if d < 128 and 128 % d == 0:
        groups = 128 // d

    x_flat = x.reshape(rows, d)
    pad_rows = (-rows) % groups if groups > 1 else 0
    if pad_rows:
        x_flat = jnp.concatenate(
            [x_flat, jnp.zeros((pad_rows, d), dtype=x.dtype)], axis=0)
    total_rows = rows + pad_rows
    r2 = total_rows // groups
    d2 = d * groups
    x2 = x_flat.reshape(r2, d2)

    alpha32 = jnp.asarray(alpha, dtype=jnp.float32).reshape(1)
    bias32 = jnp.asarray(bias, dtype=jnp.float32).reshape(1)

    seg_mat = None
    if groups > 1:
        seg_r = jnp.arange(d2, dtype=jnp.int32)[:, None] // d
        seg_c = jnp.arange(d2, dtype=jnp.int32)[None, :] // d
        seg_mat = (seg_r == seg_c).astype(jnp.float32)   # (d2, d2) block-diag

    # ---- VMEM-aware tile sizing ---------------------------------------------
    dtype_bytes = jnp.dtype(x.dtype).itemsize
    sublane = max(8, 32 // dtype_bytes)      # 8 (f32), 16 (bf16), 32 (int8)

    try:
        vmem_cap = int(pltpu.get_tpu_info().vmem_capacity_bytes)
    except Exception:
        vmem_cap = 64 * 1024 * 1024          # conservative (v7x per-TC VMEM)

    cores = _num_tensorcores()

    bytes_per_row = d2 * dtype_bytes
    f32_row_bytes = d2 * 4
    # Real per-row live footprint: double-buffered in + out tiles plus ~5
    # full-width f32 temporaries inside the kernel (f32 copy, centered x,
    # segment sums, var/scale chain, pre-cast output).
    footprint_per_row = 4 * bytes_per_row + 5 * f32_row_bytes
    matrix_bytes = 2 * d2 * d2 * 4 if groups > 1 else 0

    vmem_budget = (vmem_cap * 3) // 5        # ~60% of physical VMEM
    target_in_bytes = 8 << 20                # ~8 MiB per input buffer target

    if block_rows is None:
        by_vmem = max(1, (vmem_budget - matrix_bytes) // footprint_per_row)
        by_target = max(1, target_in_bytes // max(bytes_per_row, 1))
        block_rows = min(by_vmem, by_target)
    block_rows = int(max(1, min(block_rows, r2)))

    if block_rows >= r2:
        block_rows = r2
        # On 2-TC chips (v7x) split the row axis into >=4 roughly even steps so
        # both TensorCores get work; skip on single-TC chips (pure overhead).
        if cores >= 2 and r2 >= 4 * sublane:
            steps = max(4, 2 * cores)
            block_rows = -(-r2 // steps)
            block_rows = -(-block_rows // sublane) * sublane
    else:
        block_rows = max(sublane, (block_rows // sublane) * sublane)
        # Re-clamp after sublane rounding so the working set still fits VMEM.
        max_rows = max(sublane,
                       ((vmem_budget - matrix_bytes) // footprint_per_row)
                       // sublane * sublane)
        block_rows = min(block_rows, max_rows)
        # TODO(synk): for huge D where even `sublane` rows overflow the VMEM
        # budget, add a lane-chunked grid axis with running sum/sum-sq accumulators.
    block_rows = int(min(block_rows, r2))

    grid = (pl.cdiv(r2, block_rows),)

    live_bytes = footprint_per_row * block_rows + matrix_bytes
    vmem_limit = int(min(max(live_bytes + (8 << 20), 32 << 20),
                         max(vmem_cap - (4 << 20), 32 << 20)))

    # ---- pallas_call ----------------------------------------------------------
    if groups > 1:
        kernel = functools.partial(_layernorm_kernel_grouped, eps=float(eps), d=d)
        in_specs = [
            pl.BlockSpec(memory_space=pltpu.MemorySpace.SMEM),     # alpha (1,)
            pl.BlockSpec(memory_space=pltpu.MemorySpace.SMEM),     # bias  (1,)
            pl.BlockSpec((block_rows, d2), lambda i: (i, 0)),      # x tile
            pl.BlockSpec((d2, d2), lambda i: (0, 0)),              # block-diag M
        ]
        args = (alpha32, bias32, x2, seg_mat)
    else:
        kernel = functools.partial(_layernorm_kernel_plain, eps=float(eps), d=d)
        in_specs = [
            pl.BlockSpec(memory_space=pltpu.MemorySpace.SMEM),     # alpha (1,)
            pl.BlockSpec(memory_space=pltpu.MemorySpace.SMEM),     # bias  (1,)
            pl.BlockSpec((block_rows, d2), lambda i: (i, 0)),      # x tile
        ]
        args = (alpha32, bias32, x2)

    out2 = pl.pallas_call(
        kernel,
        out_shape=jax.ShapeDtypeStruct((r2, d2), x.dtype),
        grid_spec=pltpu.PrefetchScalarGridSpec(
            num_scalar_prefetch=0,
            grid=grid,
            in_specs=in_specs,
            out_specs=pl.BlockSpec((block_rows, d2), lambda i: (i, 0)),
        ),
        compiler_params=pltpu.CompilerParams(
            # "parallel" shards the row axis across TensorCores on megacore
            # chips; pltpu.CORE_PARALLEL is a possible v7x tweak if profiling
            # shows only one TC active.
            dimension_semantics=("parallel",),
            vmem_limit_bytes=vmem_limit,
        ),
    )(*args)

    out_flat = out2.reshape(total_rows, d)
    if pad_rows:
        out_flat = out_flat[:rows]
    return out_flat.reshape(orig_shape)


def _reference(x, alpha, bias, eps=1e-6):
    x32 = x.astype(jnp.float32)
    mean = jnp.mean(x32, axis=-1, keepdims=True)
    std = jnp.std(x32, axis=-1, keepdims=True, ddof=1)  # unbiased, like torch
    out = alpha.reshape(1)[0] * (x32 - mean) / (std + eps) + bias.reshape(1)[0]
    return out.astype(x.dtype)


if __name__ == "__main__":
    key = jax.random.PRNGKey(0)
    alpha = jnp.ones((1,), dtype=jnp.float32)   # nn.Parameter(torch.ones(1))
    bias = jnp.zeros((1,), dtype=jnp.float32)   # nn.Parameter(torch.zeros(1))

    cases = [
        # (shape, dtype, atol, rtol)
        ((2, 8, 32), jnp.float32, 2e-4, 2e-4),     # module-sized demo, fold path (groups=4)
        ((5, 7, 32), jnp.float32, 2e-4, 2e-4),     # fold path with row padding (35 % 4 != 0)
        ((2, 3, 4), jnp.float32, 2e-4, 2e-4),      # tiny D (groups=32)
        ((4, 64, 256), jnp.float32, 2e-4, 2e-4),   # lane-dense D, multi-step grid
        ((3, 100, 160), jnp.float32, 2e-4, 2e-4),  # non-128-multiple D + tail tile
        ((2, 64, 512), jnp.bfloat16, 5e-2, 5e-2),  # bf16 path (16-row sublane packing)
    ]

    for i, (shape, dtype, atol, rtol) in enumerate(cases):
        key, sub = jax.random.split(key)
        x = jax.random.normal(sub, shape, dtype=jnp.float32).astype(dtype)
        out = layer_normalization(x, alpha, bias, eps=1e-6)
        out = jax.block_until_ready(out)
        ref = _reference(x, alpha, bias, eps=1e-6)
        assert out.shape == x.shape
        assert jnp.allclose(out.astype(jnp.float32), ref.astype(jnp.float32),
                            atol=atol, rtol=rtol), f"mismatch vs reference in case {i}"

    print("KERNEL_OK")
</pallas_src>

<mosaic_0001>
module attributes {stable_mosaic.version = 11 : i64} {
  func.func @_layernorm_kernel_grouped(%arg0: i32, %arg1: memref<1xf32, #tpu.memory_space<smem>>, %arg2: memref<1xf32, #tpu.memory_space<smem>>, %arg3: memref<4x128xf32, #tpu.memory_space<vmem>>, %arg4: memref<128x128xf32, #tpu.memory_space<vmem>>, %arg5: memref<4x128xf32, #tpu.memory_space<vmem>>) attributes {dimension_semantics = [#tpu.dimension_semantics<parallel>], iteration_bounds = array<i64: 1>, scalar_prefetch = 0 : i64, scratch_operands = 0 : i64, tpu.core_type = #tpu.core_type<tc>, window_params = [{transform_indices = @transform_0, window_bounds = array<i64: 1>}, {transform_indices = @transform_1, window_bounds = array<i64: 1>}, {transform_indices = @transform_2, window_bounds = array<i64: 4, 128>}, {pipeline_mode = #tpu.pipeline_mode<synchronous>, transform_indices = @transform_3, window_bounds = array<i64: 128, 128>}, {transform_indices = @transform_4, window_bounds = array<i64: 4, 128>}]} {
    %c0 = arith.constant 0 : index
    %c0_0 = arith.constant 0 : index
    %0 = vector.load %arg3[%c0, %c0_0] : memref<4x128xf32, #tpu.memory_space<vmem>>, vector<4x128xf32>
    %c0_1 = arith.constant 0 : index
    %c0_2 = arith.constant 0 : index
    %1 = vector.load %arg4[%c0_1, %c0_2] : memref<128x128xf32, #tpu.memory_space<vmem>>, vector<128x128xf32>
    %c0_3 = arith.constant 0 : index
    %2 = memref.load %arg1[%c0_3] : memref<1xf32, #tpu.memory_space<smem>>
    %c0_4 = arith.constant 0 : index
    %3 = memref.load %arg2[%c0_4] : memref<1xf32, #tpu.memory_space<smem>>
    %cst = arith.constant dense<0.000000e+00> : vector<4x128xf32>
    %4 = tpu.matmul %0, %1, %cst {dimension_numbers = #tpu.dot_dimension_numbers<[1], [0], [0], [1], [0, 0, 1, 1], [], []>, precision = #tpu.contract_precision<fp32>} : vector<4x128xf32>, vector<128x128xf32>, vector<4x128xf32> -> vector<4x128xf32>
    %cst_5 = arith.constant 3.125000e-02 : f32
    %5 = vector.broadcast %cst_5 : f32 to vector<4x128xf32>
    %6 = arith.mulf %4, %5 : vector<4x128xf32>
    %7 = arith.subf %0, %6 : vector<4x128xf32>
    %8 = arith.mulf %7, %7 : vector<4x128xf32>
    %cst_6 = arith.constant dense<0.000000e+00> : vector<4x128xf32>
    %9 = tpu.matmul %8, %1, %cst_6 {dimension_numbers = #tpu.dot_dimension_numbers<[1], [0], [0], [1], [0, 0, 1, 1], [], []>, precision = #tpu.contract_precision<fp32>} : vector<4x128xf32>, vector<128x128xf32>, vector<4x128xf32> -> vector<4x128xf32>
    %cst_7 = arith.constant 0.0322580636 : f32
    %10 = vector.broadcast %cst_7 : f32 to vector<4x128xf32>
    %11 = arith.mulf %9, %10 : vector<4x128xf32>
    %cst_8 = arith.constant 0.000000e+00 : f32
    %12 = vector.broadcast %cst_8 : f32 to vector<4x128xf32>
    %13 = arith.maximumf %11, %12 : vector<4x128xf32>
    %14 = math.sqrt %13 : vector<4x128xf32>
    %cst_9 = arith.constant 9.99999997E-7 : f32
    %15 = vector.broadcast %cst_9 : f32 to vector<4x128xf32>
    %16 = arith.addf %14, %15 : vector<4x128xf32>
    %17 = tpu.reciprocal %16 {approx = true} : vector<4x128xf32> -> vector<4x128xf32>
    %18 = arith.mulf %16, %17 : vector<4x128xf32>
    %cst_10 = arith.constant 2.000000e+00 : f32
    %19 = vector.broadcast %cst_10 : f32 to vector<4x128xf32>
    %20 = arith.subf %19, %18 : vector<4x128xf32>
    %21 = arith.mulf %17, %20 : vector<4x128xf32>
    %22 = vector.broadcast %2 : f32 to vector<4x128xf32>
    %23 = arith.mulf %22, %21 : vector<4x128xf32>
    %24 = arith.mulf %7, %23 : vector<4x128xf32>
    %25 = vector.broadcast %3 : f32 to vector<4x128xf32>
    %26 = arith.addf %24, %25 : vector<4x128xf32>
    %c0_11 = arith.constant 0 : index
    %c0_12 = arith.constant 0 : index
    %27 = vector.load %arg5[%c0_11, %c0_12] : memref<4x128xf32, #tpu.memory_space<vmem>>, vector<4x128xf32>
    tpu.vector_store %arg5[%c0_11, %c0_12], %26 {strides = array<i32>} : memref<4x128xf32, #tpu.memory_space<vmem>>, vector<4x128xf32>,
    return
  }
  func.func @transform_0(%arg0: i32) -> i32 {
    %c0_i32 = arith.constant 0 : i32
    %c0_i32_0 = arith.constant 0 : i32
    return %c0_i32 : i32
  }
  func.func @transform_1(%arg0: i32) -> i32 {
    %c0_i32 = arith.constant 0 : i32
    %c0_i32_0 = arith.constant 0 : i32
    return %c0_i32 : i32
  }
  func.func @transform_2(%arg0: i32) -> (i32, i32) {
    %c0_i32 = arith.constant 0 : i32
    %c0_i32_0 = arith.constant 0 : i32
    return %arg0, %c0_i32 : i32, i32
  }
  func.func @transform_3(%arg0: i32) -> (i32, i32) {
    %c0_i32 = arith.constant 0 : i32
    %c0_i32_0 = arith.constant 0 : i32
    %c0_i32_1 = arith.constant 0 : i32
    return %c0_i32, %c0_i32_0 : i32, i32
  }
  func.func @transform_4(%arg0: i32) -> (i32, i32) {
    %c0_i32 = arith.constant 0 : i32
    %c0_i32_0 = arith.constant 0 : i32
    return %arg0, %c0_i32 : i32, i32
  }
}

</mosaic_0001>

<llo_original>
// kernel: tpu_custom_call.1
$region0: #{tpu_custom_call.1}
  #allocation0 [shape = 'u32[]', space=smem, size = 0x4, offset = 0x4, fixed_abs, tag = 'smem constant byte address 0x4 - core index']
  #allocation1 [shape = 'u32[144,128]{1,0:T(1,128)}', space=vmem, size = 0x12000, scoped, tag = 'internal scratch']
  #allocation2 [shape = 'f32[1]{0:T(128)S(6)}', space=smem, size = 0x200, scoped, tag = 'scoped memory for tpu_custom_call.1']
  #allocation3 [shape = 'f32[1]{0:T(128)S(6)}', space=smem, size = 0x200, scoped, tag = 'scoped memory for tpu_custom_call.1']
  %s0 = inlined_call_operand.<no memory space> [shape: f32[1], index: 0, kind: input, shape index: {}]
  %s1 = inlined_call_operand.<no memory space> [shape: f32[1], index: 1, kind: input, shape index: {}]
  %s2 = inlined_call_operand.vmem [shape: f32[4,128], index: 2, kind: input, shape index: {}]
  %s3 = inlined_call_operand.hbm [shape: f32[128,128], index: 3, kind: input, shape index: {}]
  %s4 = inlined_call_operand.hbm [shape: f32[4,128], index: 4, kind: output, shape index: {}]
  %s5 = sld [smem:[#allocation0]]
  $region30: #{tpu_custom_call.1} parent=0
    _
  %s7 = ssub.s32 1, %s5
  %s8 = scalar_select 0, %s7, %s5
  %9 = sst [smem:[#allocation2]] %s0
  %10 = sst [smem:[#allocation3]] %s1
  $region1: #{tpu_custom_call.1} parent=0
    #allocation4 [shape = 'u8[65536]{0}', space=vmem, size = 0x10000, scoped, tag = 'input window, operand 3, single buffered']
    #allocation5 [shape = 's32[1]{0}', space=sflag, size = 0x4, scoped, tag = 'scoped memory for tpu_custom_call.1']
    #allocation6 [shape = 's32[1]{0}', space=sflag, size = 0x4, scoped, tag = 'scoped memory for tpu_custom_call.1']
    #allocation7 [shape = 'u8[2048]{0}', space=vmem, size = 0x800, scoped, tag = 'output window, operand 0, single buffered']
    %11 = vsyncpa [#allocation5], 0
    %12 = vsyncpa [#allocation6], 0
    // Predicated region
    $region2: #{tpu_custom_call.1} parent=1 // pred_check
      _
    $region3: #{tpu_custom_call.1} parent=1 // pred_check_branch
      %14 = sbr.rel (0) target = $region5
    $region4: #{tpu_custom_call.1} parent=1 // pred_region
      _
    $region5: #{tpu_custom_call.1} parent=1 // pred_fallthru
      _
    // Predicated region
    $region6: #{tpu_custom_call.1} parent=1 // pred_check
      _
    $region7: #{tpu_custom_call.1} parent=1 // pred_check_branch
      %16 = sbr.rel (0) target = $region9
    $region8: #{tpu_custom_call.1} parent=1 // pred_region
      _
    $region9: #{tpu_custom_call.1} parent=1 // pred_fallthru
      _
    // Predicated region
    $region10: #{tpu_custom_call.1} parent=1 // pred_check
      _
    $region11: #{tpu_custom_call.1} parent=1 // pred_check_branch
      %18 = sbr.rel (0) target = $region13
    $region12: #{tpu_custom_call.1} parent=1 // pred_region
      _
    $region13: #{tpu_custom_call.1} parent=1 // pred_fallthru
      _
    // Predicated region
    $region14: #{tpu_custom_call.1} parent=1 // pred_check
      _
    $region15: #{tpu_custom_call.1} parent=1 // pred_check_branch
      %20 = sbr.rel (0) target = $region17
    $region16: #{tpu_custom_call.1} parent=1 // pred_region
      %s22 = ssub.s32 2048, 2048
      %23 = vsyncadd [#allocation5], %s22
      %s24 = sshll.u32 [#allocation4], 4
      %s25 = int_to_ptr.vmem [resolvable:$true] %s24
      %30 = dma.hbm_to_vmem [thread:$0]  %s3, 2048, %s25, [#allocation5], 128, 128, 8
    $region17: #{tpu_custom_call.1} parent=1 // pred_fallthru
      _
    // Predicated region
    $region18: #{tpu_custom_call.1} parent=1 // pred_check
      _
    $region19: #{tpu_custom_call.1} parent=1 // pred_check_branch
      %32 = sbr.rel (0) target = $region21
    $region20: #{tpu_custom_call.1} parent=1 // pred_region
      %33 = dma.done [#allocation5], 2048
    $region21: #{tpu_custom_call.1} parent=1 // pred_fallthru
      _
    %v34 = vld [vmem:[%s2] sm:$0xf]
    %v35 = vld [vmem:[#allocation4] sm:$0xff]
    %v36 = vld [vmem:[#allocation4 + $0x8] sm:$0xff]
    %v37 = vld [vmem:[#allocation4 + $0x10] sm:$0xff]
    %v38 = vld [vmem:[#allocation4 + $0x18] sm:$0xff]
    %v39 = vld [vmem:[#allocation4 + $0x20] sm:$0xff]
    %v40 = vld [vmem:[#allocation4 + $0x28] sm:$0xff]
    %v41 = vld [vmem:[#allocation4 + $0x30] sm:$0xff]
    %v42 = vld [vmem:[#allocation4 + $0x38] sm:$0xff]
    %v43 = vld [vmem:[#allocation4 + $0x40] sm:$0xff]
    %v44 = vld [vmem:[#allocation4 + $0x48] sm:$0xff]
    %v45 = vld [vmem:[#allocation4 + $0x50] sm:$0xff]
    %v46 = vld [vmem:[#allocation4 + $0x58] sm:$0xff]
    %v47 = vld [vmem:[#allocation4 + $0x60] sm:$0xff]
    %v48 = vld [vmem:[#allocation4 + $0x68] sm:$0xff]
    %v49 = vld [vmem:[#allocation4 + $0x70] sm:$0xff]
    %v50 = vld [vmem:[#allocation4 + $0x78] sm:$0xff]
    %s51 = sld [smem:[#allocation2]]
    %s52 = sld [smem:[#allocation3]]
    %53 = vmatprep.subr.mxu0 0.0
    %v54 = vand.u32 %v35, 4294901760
    %55 = vmatpush1.msra.mxu0 %v54
    %56 = vmatprep.subr.mxu0 0.0
    %v57 = vand.u32 %v36, 4294901760
    %58 = vmatpush1.msra.mxu0 %v57
    %59 = vmatprep.subr.mxu0 0.0
    %v60 = vand.u32 %v37, 4294901760
    %61 = vmatpush1.msra.mxu0 %v60
    %62 = vmatprep.subr.mxu0 0.0
    %v63 = vand.u32 %v38, 4294901760
    %64 = vmatpush1.msra.mxu0 %v63
    %65 = vmatprep.subr.mxu0 0.0
    %v66 = vand.u32 %v39, 4294901760
    %67 = vmatpush1.msra.mxu0 %v66
    %68 = vmatprep.subr.mxu0 0.0
    %v69 = vand.u32 %v40, 4294901760
    %70 = vmatpush1.msra.mxu0 %v69
    %71 = vmatprep.subr.mxu0 0.0
    %v72 = vand.u32 %v41, 4294901760
    %73 = vmatpush1.msra.mxu0 %v72
    %74 = vmatprep.subr.mxu0 0.0
    %v75 = vand.u32 %v42, 4294901760
    %76 = vmatpush1.msra.mxu0 %v75
    %77 = vmatprep.subr.mxu0 0.0
    %v78 = vand.u32 %v43, 4294901760
    %79 = vmatpush1.msra.mxu0 %v78
    %80 = vmatprep.subr.mxu0 0.0
    %v81 = vand.u32 %v44, 4294901760
    %82 = vmatpush1.msra.mxu0 %v81
    %83 = vmatprep.subr.mxu0 0.0
    %v84 = vand.u32 %v45, 4294901760
    %85 = vmatpush1.msra.mxu0 %v84
    %86 = vmatprep.subr.mxu0 0.0
    %v87 = vand.u32 %v46, 4294901760
    %88 = vmatpush1.msra.mxu0 %v87
    %89 = vmatprep.subr.mxu0 0.0
    %v90 = vand.u32 %v47, 4294901760
    %91 = vmatpush1.msra.mxu0 %v90
    %92 = vmatprep.subr.mxu0 0.0
    %v93 = vand.u32 %v48, 4294901760
    %94 = vmatpush1.msra.mxu0 %v93
    %95 = vmatprep.subr.mxu0 0.0
    %v96 = vand.u32 %v49, 4294901760
    %97 = vmatpush1.msra.mxu0 %v96
    %98 = vmatprep.subr.mxu0 0.0
    %v99 = vand.u32 %v50, 4294901760
    %100 = vmatpush1.msra.mxu0 %v99
    %101 = vmatprep.subr.mxu0 0.0
    %102 = vmatpush1.msra.mxu0 0.0
    %103 = vmatprep.subr.mxu0 0.0
    %104 = vmatpush1.msra.mxu0 0.0
    %105 = vmatprep.subr.mxu0 0.0
    %106 = vmatpush1.msra.mxu0 0.0
    %107 = vmatprep.subr.mxu0 0.0
    %108 = vmatpush1.msra.mxu0 0.0
    %109 = vmatprep.subr.mxu0 0.0
    %110 = vmatpush1.msra.mxu0 0.0
    %111 = vmatprep.subr.mxu0 0.0
    %112 = vmatpush1.msra.mxu0 0.0
    %113 = vmatprep.subr.mxu0 0.0
    %114 = vmatpush1.msra.mxu0 0.0
    %115 = vmatprep.subr.mxu0 0.0
    %116 = vmatpush1.msra.mxu0 0.0
    %117 = vmatprep.subr.mxu0 0.0
    %118 = vmatpush1.msra.mxu0 0.0
    %119 = vmatprep.subr.mxu0 0.0
    %120 = vmatpush1.msra.mxu0 0.0
    %121 = vmatprep.subr.mxu0 0.0
    %122 = vmatpush1.msra.mxu0 0.0
    %123 = vmatprep.subr.mxu0 0.0
    %124 = vmatpush1.msra.mxu0 0.0
    %125 = vmatprep.subr.mxu0 0.0
    %126 = vmatpush1.msra.mxu0 0.0
    %127 = vmatprep.subr.mxu0 0.0
    %128 = vmatpush1.msra.mxu0 0.0
    %129 = vmatprep.subr.mxu0 0.0
    %130 = vmatpush1.msra.mxu0 0.0
    %131 = vmatprep.subr.mxu0 0.0
    %132 = vmatpush1.msra.mxu0 0.0
    %133 = vmatprep.mubr.f32.mxu0 0.0
    %v134 = vand.u32 %v34, 4294901760
    %v135 = vsub.f32 %v34, %v134
    %v136 = vand.u32 %v135, 4294901760
    %v137 = vsub.f32 %v135, %v136
    %v138 = vand.u32 %v137, 4294901760
    %139 = vmatmul.mubr.f32.gmra.mrb[0].mxu0 %v138
    %v140 = vpop.f32.mrb[0].mxu0
    %v141 = vadd.f32 0.0, %v140
    %v142 = vpop.f32.mrb[0].mxu0
    %143 = vdwg.mxu0
    %144 = vmatprep.subr.mxu0 0.0
    %v145 = vand.u32 %v35, 4294901760
    %v146 = vsub.f32 %v35, %v145
    %v147 = vand.u32 %v146, 4294901760
    %v148 = vsub.f32 %v146, %v147
    %v149 = vand.u32 %v148, 4294901760
    %150 = vmatpush1.msra.mxu0 %v149
    %151 = vmatprep.subr.mxu0 0.0
    %v152 = vand.u32 %v36, 4294901760
    %v153 = vsub.f32 %v36, %v152
    %v154 = vand.u32 %v153, 4294901760
    %v155 = vsub.f32 %v153, %v154
    %v156 = vand.u32 %v155, 4294901760
    %157 = vmatpush1.msra.mxu0 %v156
    %158 = vmatprep.subr.mxu0 0.0
    %v159 = vand.u32 %v37, 4294901760
    %v160 = vsub.f32 %v37, %v159
    %v161 = vand.u32 %v160, 4294901760
    %v162 = vsub.f32 %v160, %v161
    %v163 = vand.u32 %v162, 4294901760
    %164 = vmatpush1.msra.mxu0 %v163
    %165 = vmatprep.subr.mxu0 0.0
    %v166 = vand.u32 %v38, 4294901760
    %v167 = vsub.f32 %v38, %v166
    %v168 = vand.u32 %v167, 4294901760
    %v169 = vsub.f32 %v167, %v168
    %v170 = vand.u32 %v169, 4294901760
    %171 = vmatpush1.msra.mxu0 %v170
    %172 = vmatprep.subr.mxu0 0.0
    %v173 = vand.u32 %v39, 4294901760
    %v174 = vsub.f32 %v39, %v173
    %v175 = vand.u32 %v174, 4294901760
    %v176 = vsub.f32 %v174, %v175
    %v177 = vand.u32 %v176, 4294901760
    %178 = vmatpush1.msra.mxu0 %v177
    %179 = vmatprep.subr.mxu0 0.0
    %v180 = vand.u32 %v40, 4294901760
    %v181 = vsub.f32 %v40, %v180
    %v182 = vand.u32 %v181, 4294901760
    %v183 = vsub.f32 %v181, %v182
    %v184 = vand.u32 %v183, 4294901760
    %185 = vmatpush1.msra.mxu0 %v184
    %186 = vmatprep.subr.mxu0 0.0
    %v187 = vand.u32 %v41, 4294901760
    %v188 = vsub.f32 %v41, %v187
    %v189 = vand.u32 %v188, 4294901760
    %v190 = vsub.f32 %v188, %v189
    %v191 = vand.u32 %v190, 4294901760
    %192 = vmatpush1.msra.mxu0 %v191
    %193 = vmatprep.subr.mxu0 0.0
    %v194 = vand.u32 %v42, 4294901760
    %v195 = vsub.f32 %v42, %v194
    %v196 = vand.u32 %v195, 4294901760
    %v197 = vsub.f32 %v195, %v196
    %v198 = vand.u32 %v197, 4294901760
    %199 = vmatpush1.msra.mxu0 %v198
    %200 = vmatprep.subr.mxu0 0.0
    %v201 = vand.u32 %v43, 4294901760
    %v202 = vsub.f32 %v43, %v201
    %v203 = vand.u32 %v202, 4294901760
    %v204 = vsub.f32 %v202, %v203
    %v205 = vand.u32 %v204, 4294901760
    %206 = vmatpush1.msra.mxu0 %v205
    %207 = vmatprep.subr.mxu0 0.0
    %v208 = vand.u32 %v44, 4294901760
    %v209 = vsub.f32 %v44, %v208
    %v210 = vand.u32 %v209, 4294901760
    %v211 = vsub.f32 %v209, %v210
    %v212 = vand.u32 %v211, 4294901760
    %213 = vmatpush1.msra.mxu0 %v212
    %214 = vmatprep.subr.mxu0 0.0
    %v215 = vand.u32 %v45, 4294901760
    %v216 = vsub.f32 %v45, %v215
    %v217 = vand.u32 %v216, 4294901760
    %v218 = vsub.f32 %v216, %v217
    %v219 = vand.u32 %v218, 4294901760
    %220 = vmatpush1.msra.mxu0 %v219
    %221 = vmatprep.subr.mxu0 0.0
    %v222 = vand.u32 %v46, 4294901760
    %v223 = vsub.f32 %v46, %v222
    %v224 = vand.u32 %v223, 4294901760
    %v225 = vsub.f32 %v223, %v224
    %v226 = vand.u32 %v225, 4294901760
    %227 = vmatpush1.msra.mxu0 %v226
    %228 = vmatprep.subr.mxu0 0.0
    %v229 = vand.u32 %v47, 4294901760
    %v230 = vsub.f32 %v47, %v229
    %v231 = vand.u32 %v230, 4294901760
    %v232 = vsub.f32 %v230, %v231
    %v233 = vand.u32 %v232, 4294901760
    %234 = vmatpush1.msra.mxu0 %v233
    %235 = vmatprep.subr.mxu0 0.0
    %v236 = vand.u32 %v48, 4294901760
    %v237 = vsub.f32 %v48, %v236
    %v238 = vand.u32 %v237, 4294901760
    %v239 = vsub.f32 %v237, %v238
    %v240 = vand.u32 %v239, 4294901760
    %241 = vmatpush1.msra.mxu0 %v240
    %242 = vmatprep.subr.mxu0 0.0
    %v243 = vand.u32 %v49, 4294901760
    %v244 = vsub.f32 %v49, %v243
    %v245 = vand.u32 %v244, 4294901760
    %v246 = vsub.f32 %v244, %v245
    %v247 = vand.u32 %v246, 4294901760
    %248 = vmatpush1.msra.mxu0 %v247
    %249 = vmatprep.subr.mxu0 0.0
    %v250 = vand.u32 %v50, 4294901760
    %v251 = vsub.f32 %v50, %v250
    %v252 = vand.u32 %v251, 4294901760
    %v253 = vsub.f32 %v251, %v252
    %v254 = vand.u32 %v253, 4294901760
    %255 = vmatpush1.msra.mxu0 %v254
    %256 = vmatprep.subr.mxu0 0.0
    %257 = vmatpush1.msra.mxu0 0.0
    %258 = vmatprep.subr.mxu0 0.0
    %259 = vmatpush1.msra.mxu0 0.0
    %260 = vmatprep.subr.mxu0 0.0
    %261 = vmatpush1.msra.mxu0 0.0
    %262 = vmatprep.subr.mxu0 0.0
    %263 = vmatpush1.msra.mxu0 0.0
    %264 = vmatprep.subr.mxu0 0.0
    %265 = vmatpush1.msra.mxu0 0.0
    %266 = vmatprep.subr.mxu0 0.0
    %267 = vmatpush1.msra.mxu0 0.0
    %268 = vmatprep.subr.mxu0 0.0
    %269 = vmatpush1.msra.mxu0 0.0
    %270 = vmatprep.subr.mxu0 0.0
    %271 = vmatpush1.msra.mxu0 0.0
    %272 = vmatprep.subr.mxu0 0.0
    %273 = vmatpush1.msra.mxu0 0.0
    %274 = vmatprep.subr.mxu0 0.0
    %275 = vmatpush1.msra.mxu0 0.0
    %276 = vmatprep.subr.mxu0 0.0
    %277 = vmatpush1.msra.mxu0 0.0
    %278 = vmatprep.subr.mxu0 0.0
    %279 = vmatpush1.msra.mxu0 0.0
    %280 = vmatprep.subr.mxu0 0.0
    %281 = vmatpush1.msra.mxu0 0.0
    %282 = vmatprep.subr.mxu0 0.0
    %283 = vmatpush1.msra.mxu0 0.0
    %284 = vmatprep.subr.mxu0 0.0
    %285 = vmatpush1.msra.mxu0 0.0
    %286 = vmatprep.subr.mxu0 0.0
    %287 = vmatpush1.msra.mxu0 0.0
    %288 = vmatprep.mubr.f32.mxu0 0.0
    %v289 = vand.u32 %v34, 4294901760
    %290 = vmatmul.mubr.f32.gmra.mrb[0].mxu0 %v289
    %v291 = vpop.f32.mrb[0].mxu0
    %v292 = vadd.f32 %v141, %v291
    %v293 = vpop.f32.mrb[0].mxu0
    %294 = vdwg.mxu0
    %295 = vmatprep.subr.mxu0 0.0
    %v296 = vand.u32 %v35, 4294901760
    %v297 = vsub.f32 %v35, %v296
    %298 = vmatpush1.msra.mxu0 %v297
    %299 = vmatprep.subr.mxu0 0.0
    %v300 = vand.u32 %v36, 4294901760
    %v301 = vsub.f32 %v36, %v300
    %302 = vmatpush1.msra.mxu0 %v301
    %303 = vmatprep.subr.mxu0 0.0
    %v304 = vand.u32 %v37, 4294901760
    %v305 = vsub.f32 %v37, %v304
    %306 = vmatpush1.msra.mxu0 %v305
    %307 = vmatprep.subr.mxu0 0.0
    %v308 = vand.u32 %v38, 4294901760
    %v309 = vsub.f32 %v38, %v308
    %310 = vmatpush1.msra.mxu0 %v309
    %311 = vmatprep.subr.mxu0 0.0
    %v312 = vand.u32 %v39, 4294901760
    %v313 = vsub.f32 %v39, %v312
    %314 = vmatpush1.msra.mxu0 %v313
    %315 = vmatprep.subr.mxu0 0.0
    %v316 = vand.u32 %v40, 4294901760
    %v317 = vsub.f32 %v40, %v316
    %318 = vmatpush1.msra.mxu0 %v317
    %319 = vmatprep.subr.mxu0 0.0
    %v320 = vand.u32 %v41, 4294901760
    %v321 = vsub.f32 %v41, %v320
    %322 = vmatpush1.msra.mxu0 %v321
    %323 = vmatprep.subr.mxu0 0.0
    %v324 = vand.u32 %v42, 4294901760
    %v325 = vsub.f32 %v42, %v324
    %326 = vmatpush1.msra.mxu0 %v325
    %327 = vmatprep.subr.mxu0 0.0
    %v328 = vand.u32 %v43, 4294901760
    %v329 = vsub.f32 %v43, %v328
    %330 = vmatpush1.msra.mxu0 %v329
    %331 = vmatprep.subr.mxu0 0.0
    %v332 = vand.u32 %v44, 4294901760
    %v333 = vsub.f32 %v44, %v332
    %334 = vmatpush1.msra.mxu0 %v333
    %335 = vmatprep.subr.mxu0 0.0
    %v336 = vand.u32 %v45, 4294901760
    %v337 = vsub.f32 %v45, %v336
    %338 = vmatpush1.msra.mxu0 %v337
    %339 = vmatprep.subr.mxu0 0.0
    %v340 = vand.u32 %v46, 4294901760
    %v341 = vsub.f32 %v46, %v340
    %342 = vmatpush1.msra.mxu0 %v341
    %343 = vmatprep.subr.mxu0 0.0
    %v344 = vand.u32 %v47, 4294901760
    %v345 = vsub.f32 %v47, %v344
    %346 = vmatpush1.msra.mxu0 %v345
    %347 = vmatprep.subr.mxu0 0.0
    %v348 = vand.u32 %v48, 4294901760
    %v349 = vsub.f32 %v48, %v348
    %350 = vmatpush1.msra.mxu0 %v349
    %351 = vmatprep.subr.mxu0 0.0
    %v352 = vand.u32 %v49, 4294901760
    %v353 = vsub.f32 %v49, %v352
    %354 = vmatpush1.msra.mxu0 %v353
    %355 = vmatprep.subr.mxu0 0.0
    %v356 = vand.u32 %v50, 4294901760
    %v357 = vsub.f32 %v50, %v356
    %358 = vmatpush1.msra.mxu0 %v357
    %359 = vmatprep.subr.mxu0 0.0
    %360 = vmatpush1.msra.mxu0 0.0
    %361 = vmatprep.subr.mxu0 0.0
    %362 = vmatpush1.msra.mxu0 0.0
    %363 = vmatprep.subr.mxu0 0.0
    %364 = vmatpush1.msra.mxu0 0.0
    %365 = vmatprep.subr.mxu0 0.0
    %366 = vmatpush1.msra.mxu0 0.0
    %367 = vmatprep.subr.mxu0 0.0
    %368 = vmatpush1.msra.mxu0 0.0
    %369 = vmatprep.subr.mxu0 0.0
    %370 = vmatpush1.msra.mxu0 0.0
    %371 = vmatprep.subr.mxu0 0.0
    %372 = vmatpush1.msra.mxu0 0.0
    %373 = vmatprep.subr.mxu0 0.0
    %374 = vmatpush1.msra.mxu0 0.0
    %375 = vmatprep.subr.mxu0 0.0
    %376 = vmatpush1.msra.mxu0 0.0
    %377 = vmatprep.subr.mxu0 0.0
    %378 = vmatpush1.msra.mxu0 0.0
    %379 = vmatprep.subr.mxu0 0.0
    %380 = vmatpush1.msra.mxu0 0.0
    %381 = vmatprep.subr.mxu0 0.0
    %382 = vmatpush1.msra.mxu0 0.0
    %383 = vmatprep.subr.mxu0 0.0
    %384 = vmatpush1.msra.mxu0 0.0
    %385 = vmatprep.subr.mxu0 0.0
    %386 = vmatpush1.msra.mxu0 0.0
    %387 = vmatprep.subr.mxu0 0.0
    %388 = vmatpush1.msra.mxu0 0.0
    %389 = vmatprep.subr.mxu0 0.0
    %390 = vmatpush1.msra.mxu0 0.0
    %391 = vmatprep.mubr.f32.mxu0 0.0
    %v392 = vand.u32 %v34, 4294901760
    %v393 = vsub.f32 %v34, %v392
    %394 = vmatmul.mubr.f32.gmra.mrb[0].mxu0 %v393
    %v395 = vpop.f32.mrb[0].mxu0
    %v396 = vadd.f32 %v292, %v395
    %v397 = vpop.f32.mrb[0].mxu0
    %398 = vdwg.mxu0
    %399 = vmatprep.subr.mxu0 0.0
    %v400 = vand.u32 %v35, 4294901760
    %401 = vmatpush1.msra.mxu0 %v400
    %402 = vmatprep.subr.mxu0 0.0
    %v403 = vand.u32 %v36, 4294901760
    %404 = vmatpush1.msra.mxu0 %v403
    %405 = vmatprep.subr.mxu0 0.0
    %v406 = vand.u32 %v37, 4294901760
    %407 = vmatpush1.msra.mxu0 %v406
    %408 = vmatprep.subr.mxu0 0.0
    %v409 = vand.u32 %v38, 4294901760
    %410 = vmatpush1.msra.mxu0 %v409
    %411 = vmatprep.subr.mxu0 0.0
    %v412 = vand.u32 %v39, 4294901760
    %413 = vmatpush1.msra.mxu0 %v412
    %414 = vmatprep.subr.mxu0 0.0
    %v415 = vand.u32 %v40, 4294901760
    %416 = vmatpush1.msra.mxu0 %v415
    %417 = vmatprep.subr.mxu0 0.0
    %v418 = vand.u32 %v41, 4294901760
    %419 = vmatpush1.msra.mxu0 %v418
    %420 = vmatprep.subr.mxu0 0.0
    %v421 = vand.u32 %v42, 4294901760
    %422 = vmatpush1.msra.mxu0 %v421
    %423 = vmatprep.subr.mxu0 0.0
    %v424 = vand.u32 %v43, 4294901760
    %425 = vmatpush1.msra.mxu0 %v424
    %426 = vmatprep.subr.mxu0 0.0
    %v427 = vand.u32 %v44, 4294901760
    %428 = vmatpush1.msra.mxu0 %v427
    %429 = vmatprep.subr.mxu0 0.0
    %v430 = vand.u32 %v45, 4294901760
    %431 = vmatpush1.msra.mxu0 %v430
    %432 = vmatprep.subr.mxu0 0.0
    %v433 = vand.u32 %v46, 4294901760
    %434 = vmatpush1.msra.mxu0 %v433
    %435 = vmatprep.subr.mxu0 0.0
    %v436 = vand.u32 %v47, 4294901760
    %437 = vmatpush1.msra.mxu0 %v436
    %438 = vmatprep.subr.mxu0 0.0
    %v439 = vand.u32 %v48, 4294901760
    %440 = vmatpush1.msra.mxu0 %v439
    %441 = vmatprep.subr.mxu0 0.0
    %v442 = vand.u32 %v49, 4294901760
    %443 = vmatpush1.msra.mxu0 %v442
    %444 = vmatprep.subr.mxu0 0.0
    %v445 = vand.u32 %v50, 4294901760
    %446 = vmatpush1.msra.mxu0 %v445
    %447 = vmatprep.subr.mxu0 0.0
    %448 = vmatpush1.msra.mxu0 0.0
    %449 = vmatprep.subr.mxu0 0.0
    %450 = vmatpush1.msra.mxu0 0.0
    %451 = vmatprep.subr.mxu0 0.0
    %452 = vmatpush1.msra.mxu0 0.0
    %453 = vmatprep.subr.mxu0 0.0
    %454 = vmatpush1.msra.mxu0 0.0
    %455 = vmatprep.subr.mxu0 0.0
    %456 = vmatpush1.msra.mxu0 0.0
    %457 = vmatprep.subr.mxu0 0.0
    %458 = vmatpush1.msra.mxu0 0.0
    %459 = vmatprep.subr.mxu0 0.0
    %460 = vmatpush1.msra.mxu0 0.0
    %461 = vmatprep.subr.mxu0 0.0
    %462 = vmatpush1.msra.mxu0 0.0
    %463 = vmatprep.subr.mxu0 0.0
    %464 = vmatpush1.msra.mxu0 0.0
    %465 = vmatprep.subr.mxu0 0.0
    %466 = vmatpush1.msra.mxu0 0.0
    %467 = vmatprep.subr.mxu0 0.0
    %468 = vmatpush1.msra.mxu0 0.0
    %469 = vmatprep.subr.mxu0 0.0
    %470 = vmatpush1.msra.mxu0 0.0
    %471 = vmatprep.subr.mxu0 0.0
    %472 = vmatpush1.msra.mxu0 0.0
    %473 = vmatprep.subr.mxu0 0.0
    %474 = vmatpush1.msra.mxu0 0.0
    %475 = vmatprep.subr.mxu0 0.0
    %476 = vmatpush1.msra.mxu0 0.0
    %477 = vmatprep.subr.mxu0 0.0
    %478 = vmatpush1.msra.mxu0 0.0
    %479 = vmatprep.mubr.f32.mxu0 0.0
    %v480 = vand.u32 %v34, 4294901760
    %v481 = vsub.f32 %v34, %v480
    %v482 = vand.u32 %v481, 4294901760
    %483 = vmatmul.mubr.f32.gmra.mrb[0].mxu0 %v482
    %v484 = vpop.f32.mrb[0].mxu0
    %v485 = vadd.f32 %v396, %v484
    %v486 = vpop.f32.mrb[0].mxu0
    %487 = vdwg.mxu0
    %488 = vmatprep.subr.mxu0 0.0
    %v489 = vand.u32 %v35, 4294901760
    %v490 = vsub.f32 %v35, %v489
    %v491 = vand.u32 %v490, 4294901760
    %492 = vmatpush1.msra.mxu0 %v491
    %493 = vmatprep.subr.mxu0 0.0
    %v494 = vand.u32 %v36, 4294901760
    %v495 = vsub.f32 %v36, %v494
    %v496 = vand.u32 %v495, 4294901760
    %497 = vmatpush1.msra.mxu0 %v496
    %498 = vmatprep.subr.mxu0 0.0
    %v499 = vand.u32 %v37, 4294901760
    %v500 = vsub.f32 %v37, %v499
    %v501 = vand.u32 %v500, 4294901760
    %502 = vmatpush1.msra.mxu0 %v501
    %503 = vmatprep.subr.mxu0 0.0
    %v504 = vand.u32 %v38, 4294901760
    %v505 = vsub.f32 %v38, %v504
    %v506 = vand.u32 %v505, 4294901760
    %507 = vmatpush1.msra.mxu0 %v506
    %508 = vmatprep.subr.mxu0 0.0
    %v509 = vand.u32 %v39, 4294901760
    %v510 = vsub.f32 %v39, %v509
    %v511 = vand.u32 %v510, 4294901760
    %512 = vmatpush1.msra.mxu0 %v511
    %513 = vmatprep.subr.mxu0 0.0
    %v514 = vand.u32 %v40, 4294901760
    %v515 = vsub.f32 %v40, %v514
    %v516 = vand.u32 %v515, 4294901760
    %517 = vmatpush1.msra.mxu0 %v516
    %518 = vmatprep.subr.mxu0 0.0
    %v519 = vand.u32 %v41, 4294901760
    %v520 = vsub.f32 %v41, %v519
    %v521 = vand.u32 %v520, 4294901760
    %522 = vmatpush1.msra.mxu0 %v521
    %523 = vmatprep.subr.mxu0 0.0
    %v524 = vand.u32 %v42, 4294901760
    %v525 = vsub.f32 %v42, %v524
    %v526 = vand.u32 %v525, 4294901760
    %527 = vmatpush1.msra.mxu0 %v526
    %528 = vmatprep.subr.mxu0 0.0
    %v529 = vand.u32 %v43, 4294901760
    %v530 = vsub.f32 %v43, %v529
    %v531 = vand.u32 %v530, 4294901760
    %532 = vmatpush1.msra.mxu0 %v531
    %533 = vmatprep.subr.mxu0 0.0
    %v534 = vand.u32 %v44, 4294901760
    %v535 = vsub.f32 %v44, %v534
    %v536 = vand.u32 %v535, 4294901760
    %537 = vmatpush1.msra.mxu0 %v536
    %538 = vmatprep.subr.mxu0 0.0
    %v539 = vand.u32 %v45, 4294901760
    %v540 = vsub.f32 %v45, %v539
    %v541 = vand.u32 %v540, 4294901760
    %542 = vmatpush1.msra.mxu0 %v541
    %543 = vmatprep.subr.mxu0 0.0
    %v544 = vand.u32 %v46, 4294901760
    %v545 = vsub.f32 %v46, %v544
    %v546 = vand.u32 %v545, 4294901760
    %547 = vmatpush1.msra.mxu0 %v546
    %548 = vmatprep.subr.mxu0 0.0
    %v549 = vand.u32 %v47, 4294901760
    %v550 = vsub.f32 %v47, %v549
    %v551 = vand.u32 %v550, 4294901760
    %552 = vmatpush1.msra.mxu0 %v551
    %553 = vmatprep.subr.mxu0 0.0
    %v554 = vand.u32 %v48, 4294901760
    %v555 = vsub.f32 %v48, %v554
    %v556 = vand.u32 %v555, 4294901760
    %557 = vmatpush1.msra.mxu0 %v556
    %558 = vmatprep.subr.mxu0 0.0
    %v559 = vand.u32 %v49, 4294901760
    %v560 = vsub.f32 %v49, %v559
    %v561 = vand.u32 %v560, 4294901760
    %562 = vmatpush1.msra.mxu0 %v561
    %563 = vmatprep.subr.mxu0 0.0
    %v564 = vand.u32 %v50, 4294901760
    %v565 = vsub.f32 %v50, %v564
    %v566 = vand.u32 %v565, 4294901760
    %567 = vmatpush1.msra.mxu0 %v566
    %568 = vmatprep.subr.mxu0 0.0
    %569 = vmatpush1.msra.mxu0 0.0
    %570 = vmatprep.subr.mxu0 0.0
    %571 = vmatpush1.msra.mxu0 0.0
    %572 = vmatprep.subr.mxu0 0.0
    %573 = vmatpush1.msra.mxu0 0.0
    %574 = vmatprep.subr.mxu0 0.0
    %575 = vmatpush1.msra.mxu0 0.0
    %576 = vmatprep.subr.mxu0 0.0
    %577 = vmatpush1.msra.mxu0 0.0
    %578 = vmatprep.subr.mxu0 0.0
    %579 = vmatpush1.msra.mxu0 0.0
    %580 = vmatprep.subr.mxu0 0.0
    %581 = vmatpush1.msra.mxu0 0.0
    %582 = vmatprep.subr.mxu0 0.0
    %583 = vmatpush1.msra.mxu0 0.0
    %584 = vmatprep.subr.mxu0 0.0
    %585 = vmatpush1.msra.mxu0 0.0
    %586 = vmatprep.subr.mxu0 0.0
    %587 = vmatpush1.msra.mxu0 0.0
    %588 = vmatprep.subr.mxu0 0.0
    %589 = vmatpush1.msra.mxu0 0.0
    %590 = vmatprep.subr.mxu0 0.0
    %591 = vmatpush1.msra.mxu0 0.0
    %592 = vmatprep.subr.mxu0 0.0
    %593 = vmatpush1.msra.mxu0 0.0
    %594 = vmatprep.subr.mxu0 0.0
    %595 = vmatpush1.msra.mxu0 0.0
    %596 = vmatprep.subr.mxu0 0.0
    %597 = vmatpush1.msra.mxu0 0.0
    %598 = vmatprep.subr.mxu0 0.0
    %599 = vmatpush1.msra.mxu0 0.0
    %600 = vmatprep.mubr.f32.mxu0 0.0
    %v601 = vand.u32 %v34, 4294901760
    %602 = vmatmul.mubr.f32.gmra.mrb[0].mxu0 %v601
    %v603 = vpop.f32.mrb[0].mxu0
    %v604 = vadd.f32 %v485, %v603
    %v605 = vpop.f32.mrb[0].mxu0
    %606 = vdwg.mxu0
    %607 = vmatprep.subr.mxu0 0.0
    %v608 = vand.u32 %v35, 4294901760
    %609 = vmatpush1.msra.mxu0 %v608
    %610 = vmatprep.subr.mxu0 0.0
    %v611 = vand.u32 %v36, 4294901760
    %612 = vmatpush1.msra.mxu0 %v611
    %613 = vmatprep.subr.mxu0 0.0
    %v614 = vand.u32 %v37, 4294901760
    %615 = vmatpush1.msra.mxu0 %v614
    %616 = vmatprep.subr.mxu0 0.0
    %v617 = vand.u32 %v38, 4294901760
    %618 = vmatpush1.msra.mxu0 %v617
    %619 = vmatprep.subr.mxu0 0.0
    %v620 = vand.u32 %v39, 4294901760
    %621 = vmatpush1.msra.mxu0 %v620
    %622 = vmatprep.subr.mxu0 0.0
    %v623 = vand.u32 %v40, 4294901760
    %624 = vmatpush1.msra.mxu0 %v623
    %625 = vmatprep.subr.mxu0 0.0
    %v626 = vand.u32 %v41, 4294901760
    %627 = vmatpush1.msra.mxu0 %v626
    %628 = vmatprep.subr.mxu0 0.0
    %v629 = vand.u32 %v42, 4294901760
    %630 = vmatpush1.msra.mxu0 %v629
    %631 = vmatprep.subr.mxu0 0.0
    %v632 = vand.u32 %v43, 4294901760
    %633 = vmatpush1.msra.mxu0 %v632
    %634 = vmatprep.subr.mxu0 0.0
    %v635 = vand.u32 %v44, 4294901760
    %636 = vmatpush1.msra.mxu0 %v635
    %637 = vmatprep.subr.mxu0 0.0
    %v638 = vand.u32 %v45, 4294901760
    %639 = vmatpush1.msra.mxu0 %v638
    %640 = vmatprep.subr.mxu0 0.0
    %v641 = vand.u32 %v46, 4294901760
    %642 = vmatpush1.msra.mxu0 %v641
    %643 = vmatprep.subr.mxu0 0.0
    %v644 = vand.u32 %v47, 4294901760
    %645 = vmatpush1.msra.mxu0 %v644
    %646 = vmatprep.subr.mxu0 0.0
    %v647 = vand.u32 %v48, 4294901760
    %648 = vmatpush1.msra.mxu0 %v647
    %649 = vmatprep.subr.mxu0 0.0
    %v650 = vand.u32 %v49, 4294901760
    %651 = vmatpush1.msra.mxu0 %v650
    %652 = vmatprep.subr.mxu0 0.0
    %v653 = vand.u32 %v50, 4294901760
    %654 = vmatpush1.msra.mxu0 %v653
    %655 = vmatprep.subr.mxu0 0.0
    %656 = vmatpush1.msra.mxu0 0.0
    %657 = vmatprep.subr.mxu0 0.0
    %658 = vmatpush1.msra.mxu0 0.0
    %659 = vmatprep.subr.mxu0 0.0
    %660 = vmatpush1.msra.mxu0 0.0
    %661 = vmatprep.subr.mxu0 0.0
    %662 = vmatpush1.msra.mxu0 0.0
    %663 = vmatprep.subr.mxu0 0.0
    %664 = vmatpush1.msra.mxu0 0.0
    %665 = vmatprep.subr.mxu0 0.0
    %666 = vmatpush1.msra.mxu0 0.0
    %667 = vmatprep.subr.mxu0 0.0
    %668 = vmatpush1.msra.mxu0 0.0
    %669 = vmatprep.subr.mxu0 0.0
    %670 = vmatpush1.msra.mxu0 0.0
    %671 = vmatprep.subr.mxu0 0.0
    %672 = vmatpush1.msra.mxu0 0.0
    %673 = vmatprep.subr.mxu0 0.0
    %674 = vmatpush1.msra.mxu0 0.0
    %675 = vmatprep.subr.mxu0 0.0
    %676 = vmatpush1.msra.mxu0 0.0
    %677 = vmatprep.subr.mxu0 0.0
    %678 = vmatpush1.msra.mxu0 0.0
    %679 = vmatprep.subr.mxu0 0.0
    %680 = vmatpush1.msra.mxu0 0.0
    %681 = vmatprep.subr.mxu0 0.0
    %682 = vmatpush1.msra.mxu0 0.0
    %683 = vmatprep.subr.mxu0 0.0
    %684 = vmatpush1.msra.mxu0 0.0
    %685 = vmatprep.subr.mxu0 0.0
    %686 = vmatpush1.msra.mxu0 0.0
    %687 = vmatprep.mubr.f32.mxu0 0.0
    %v688 = vand.u32 %v34, 4294901760
    %689 = vmatmul.mubr.f32.gmra.mrb[0].mxu0 %v688
    %v690 = vpop.f32.mrb[0].mxu0
    %v691 = vadd.f32 %v604, %v690
    %v692 = vpop.f32.mrb[0].mxu0
    %693 = vdwg.mxu0
    %v694 = vmul.f32 %v691, 0.03125
    %v695 = vsub.f32 %v34, %v694
    %v696 = vmul.f32 %v695, %v695
    %697 = vmatprep.subr.mxu0 0.0
    %v698 = vand.u32 %v35, 4294901760
    %699 = vmatpush1.msra.mxu0 %v698
    %700 = vmatprep.subr.mxu0 0.0
    %v701 = vand.u32 %v36, 4294901760
    %702 = vmatpush1.msra.mxu0 %v701
    %703 = vmatprep.subr.mxu0 0.0
    %v704 = vand.u32 %v37, 4294901760
    %705 = vmatpush1.msra.mxu0 %v704
    %706 = vmatprep.subr.mxu0 0.0
    %v707 = vand.u32 %v38, 4294901760
    %708 = vmatpush1.msra.mxu0 %v707
    %709 = vmatprep.subr.mxu0 0.0
    %v710 = vand.u32 %v39, 4294901760
    %711 = vmatpush1.msra.mxu0 %v710
    %712 = vmatprep.subr.mxu0 0.0
    %v713 = vand.u32 %v40, 4294901760
    %714 = vmatpush1.msra.mxu0 %v713
    %715 = vmatprep.subr.mxu0 0.0
    %v716 = vand.u32 %v41, 4294901760
    %717 = vmatpush1.msra.mxu0 %v716
    %718 = vmatprep.subr.mxu0 0.0
    %v719 = vand.u32 %v42, 4294901760
    %720 = vmatpush1.msra.mxu0 %v719
    %721 = vmatprep.subr.mxu0 0.0
    %v722 = vand.u32 %v43, 4294901760
    %723 = vmatpush1.msra.mxu0 %v722
    %724 = vmatprep.subr.mxu0 0.0
    %v725 = vand.u32 %v44, 4294901760
    %726 = vmatpush1.msra.mxu0 %v725
    %727 = vmatprep.subr.mxu0 0.0
    %v728 = vand.u32 %v45, 4294901760
    %729 = vmatpush1.msra.mxu0 %v728
    %730 = vmatprep.subr.mxu0 0.0
    %v731 = vand.u32 %v46, 4294901760
    %732 = vmatpush1.msra.mxu0 %v731
    %733 = vmatprep.subr.mxu0 0.0
    %v734 = vand.u32 %v47, 4294901760
    %735 = vmatpush1.msra.mxu0 %v734
    %736 = vmatprep.subr.mxu0 0.0
    %v737 = vand.u32 %v48, 4294901760
    %738 = vmatpush1.msra.mxu0 %v737
    %739 = vmatprep.subr.mxu0 0.0
    %v740 = vand.u32 %v49, 4294901760
    %741 = vmatpush1.msra.mxu0 %v740
    %742 = vmatprep.subr.mxu0 0.0
    %v743 = vand.u32 %v50, 4294901760
    %744 = vmatpush1.msra.mxu0 %v743
    %745 = vmatprep.subr.mxu0 0.0
    %746 = vmatpush1.msra.mxu0 0.0
    %747 = vmatprep.subr.mxu0 0.0
    %748 = vmatpush1.msra.mxu0 0.0
    %749 = vmatprep.subr.mxu0 0.0
    %750 = vmatpush1.msra.mxu0 0.0
    %751 = vmatprep.subr.mxu0 0.0
    %752 = vmatpush1.msra.mxu0 0.0
    %753 = vmatprep.subr.mxu0 0.0
    %754 = vmatpush1.msra.mxu0 0.0
    %755 = vmatprep.subr.mxu0 0.0
    %756 = vmatpush1.msra.mxu0 0.0
    %757 = vmatprep.subr.mxu0 0.0
    %758 = vmatpush1.msra.mxu0 0.0
    %759 = vmatprep.subr.mxu0 0.0
    %760 = vmatpush1.msra.mxu0 0.0
    %761 = vmatprep.subr.mxu0 0.0
    %762 = vmatpush1.msra.mxu0 0.0
    %763 = vmatprep.subr.mxu0 0.0
    %764 = vmatpush1.msra.mxu0 0.0
    %765 = vmatprep.subr.mxu0 0.0
    %766 = vmatpush1.msra.mxu0 0.0
    %767 = vmatprep.subr.mxu0 0.0
    %768 = vmatpush1.msra.mxu0 0.0
    %769 = vmatprep.subr.mxu0 0.0
    %770 = vmatpush1.msra.mxu0 0.0
    %771 = vmatprep.subr.mxu0 0.0
    %772 = vmatpush1.msra.mxu0 0.0
    %773 = vmatprep.subr.mxu0 0.0
    %774 = vmatpush1.msra.mxu0 0.0
    %775 = vmatprep.subr.mxu0 0.0
    %776 = vmatpush1.msra.mxu0 0.0
    %777 = vmatprep.mubr.f32.mxu0 0.0
    %v778 = vand.u32 %v696, 4294901760
    %v779 = vsub.f32 %v696, %v778
    %v780 = vand.u32 %v779, 4294901760
    %v781 = vsub.f32 %v779, %v780
    %v782 = vand.u32 %v781, 4294901760
    %783 = vmatmul.mubr.f32.gmra.mrb[0].mxu0 %v782
    %v784 = vpop.f32.mrb[0].mxu0
    %v785 = vadd.f32 0.0, %v784
    %v786 = vpop.f32.mrb[0].mxu0
    %787 = vdwg.mxu0
    %788 = vmatprep.subr.mxu0 0.0
    %v789 = vand.u32 %v35, 4294901760
    %v790 = vsub.f32 %v35, %v789
    %v791 = vand.u32 %v790, 4294901760
    %v792 = vsub.f32 %v790, %v791
    %v793 = vand.u32 %v792, 4294901760
    %794 = vmatpush1.msra.mxu0 %v793
    %795 = vmatprep.subr.mxu0 0.0
    %v796 = vand.u32 %v36, 4294901760
    %v797 = vsub.f32 %v36, %v796
    %v798 = vand.u32 %v797, 4294901760
    %v799 = vsub.f32 %v797, %v798
    %v800 = vand.u32 %v799, 4294901760
    %801 = vmatpush1.msra.mxu0 %v800
    %802 = vmatprep.subr.mxu0 0.0
    %v803 = vand.u32 %v37, 4294901760
    %v804 = vsub.f32 %v37, %v803
    %v805 = vand.u32 %v804, 4294901760
    %v806 = vsub.f32 %v804, %v805
    %v807 = vand.u32 %v806, 4294901760
    %808 = vmatpush1.msra.mxu0 %v807
    %809 = vmatprep.subr.mxu0 0.0
    %v810 = vand.u32 %v38, 4294901760
    %v811 = vsub.f32 %v38, %v810
    %v812 = vand.u32 %v811, 4294901760
    %v813 = vsub.f32 %v811, %v812
    %v814 = vand.u32 %v813, 4294901760
    %815 = vmatpush1.msra.mxu0 %v814
    %816 = vmatprep.subr.mxu0 0.0
    %v817 = vand.u32 %v39, 4294901760
    %v818 = vsub.f32 %v39, %v817
    %v819 = vand.u32 %v818, 4294901760
    %v820 = vsub.f32 %v818, %v819
    %v821 = vand.u32 %v820, 4294901760
    %822 = vmatpush1.msra.mxu0 %v821
    %823 = vmatprep.subr.mxu0 0.0
    %v824 = vand.u32 %v40, 4294901760
    %v825 = vsub.f32 %v40, %v824
    %v826 = vand.u32 %v825, 4294901760
    %v827 = vsub.f32 %v825, %v826
    %v828 = vand.u32 %v827, 4294901760
    %829 = vmatpush1.msra.mxu0 %v828
    %830 = vmatprep.subr.mxu0 0.0
    %v831 = vand.u32 %v41, 4294901760
    %v832 = vsub.f32 %v41, %v831
    %v833 = vand.u32 %v832, 4294901760
    %v834 = vsub.f32 %v832, %v833
    %v835 = vand.u32 %v834, 4294901760
    %836 = vmatpush1.msra.mxu0 %v835
    %837 = vmatprep.subr.mxu0 0.0
    %v838 = vand.u32 %v42, 4294901760
    %v839 = vsub.f32 %v42, %v838
    %v840 = vand.u32 %v839, 4294901760
    %v841 = vsub.f32 %v839, %v840
    %v842 = vand.u32 %v841, 4294901760
    %843 = vmatpush1.msra.mxu0 %v842
    %844 = vmatprep.subr.mxu0 0.0
    %v845 = vand.u32 %v43, 4294901760
    %v846 = vsub.f32 %v43, %v845
    %v847 = vand.u32 %v846, 4294901760
    %v848 = vsub.f32 %v846, %v847
    %v849 = vand.u32 %v848, 4294901760
    %850 = vmatpush1.msra.mxu0 %v849
    %851 = vmatprep.subr.mxu0 0.0
    %v852 = vand.u32 %v44, 4294901760
    %v853 = vsub.f32 %v44, %v852
    %v854 = vand.u32 %v853, 4294901760
    %v855 = vsub.f32 %v853, %v854
    %v856 = vand.u32 %v855, 4294901760
    %857 = vmatpush1.msra.mxu0 %v856
    %858 = vmatprep.subr.mxu0 0.0
    %v859 = vand.u32 %v45, 4294901760
    %v860 = vsub.f32 %v45, %v859
    %v861 = vand.u32 %v860, 4294901760
    %v862 = vsub.f32 %v860, %v861
    %v863 = vand.u32 %v862, 4294901760
    %864 = vmatpush1.msra.mxu0 %v863
    %865 = vmatprep.subr.mxu0 0.0
    %v866 = vand.u32 %v46, 4294901760
    %v867 = vsub.f32 %v46, %v866
    %v868 = vand.u32 %v867, 4294901760
    %v869 = vsub.f32 %v867, %v868
    %v870 = vand.u32 %v869, 4294901760
    %871 = vmatpush1.msra.mxu0 %v870
    %872 = vmatprep.subr.mxu0 0.0
    %v873 = vand.u32 %v47, 4294901760
    %v874 = vsub.f32 %v47, %v873
    %v875 = vand.u32 %v874, 4294901760
    %v876 = vsub.f32 %v874, %v875
    %v877 = vand.u32 %v876, 4294901760
    %878 = vmatpush1.msra.mxu0 %v877
    %879 = vmatprep.subr.mxu0 0.0
    %v880 = vand.u32 %v48, 4294901760
    %v881 = vsub.f32 %v48, %v880
    %v882 = vand.u32 %v881, 4294901760
    %v883 = vsub.f32 %v881, %v882
    %v884 = vand.u32 %v883, 4294901760
    %885 = vmatpush1.msra.mxu0 %v884
    %886 = vmatprep.subr.mxu0 0.0
    %v887 = vand.u32 %v49, 4294901760
    %v888 = vsub.f32 %v49, %v887
    %v889 = vand.u32 %v888, 4294901760
    %v890 = vsub.f32 %v888, %v889
    %v891 = vand.u32 %v890, 4294901760
    %892 = vmatpush1.msra.mxu0 %v891
    %893 = vmatprep.subr.mxu0 0.0
    %v894 = vand.u32 %v50, 4294901760
    %v895 = vsub.f32 %v50, %v894
    %v896 = vand.u32 %v895, 4294901760
    %v897 = vsub.f32 %v895, %v896
    %v898 = vand.u32 %v897, 4294901760
    %899 = vmatpush1.msra.mxu0 %v898
    %900 = vmatprep.subr.mxu0 0.0
    %901 = vmatpush1.msra.mxu0 0.0
    %902 = vmatprep.subr.mxu0 0.0
    %903 = vmatpush1.msra.mxu0 0.0
    %904 = vmatprep.subr.mxu0 0.0
    %905 = vmatpush1.msra.mxu0 0.0
    %906 = vmatprep.subr.mxu0 0.0
    %907 = vmatpush1.msra.mxu0 0.0
    %908 = vmatprep.subr.mxu0 0.0
    %909 = vmatpush1.msra.mxu0 0.0
    %910 = vmatprep.subr.mxu0 0.0
    %911 = vmatpush1.msra.mxu0 0.0
    %912 = vmatprep.subr.mxu0 0.0
    %913 = vmatpush1.msra.mxu0 0.0
    %914 = vmatprep.subr.mxu0 0.0
    %915 = vmatpush1.msra.mxu0 0.0
    %916 = vmatprep.subr.mxu0 0.0
    %917 = vmatpush1.msra.mxu0 0.0
    %918 = vmatprep.subr.mxu0 0.0
    %919 = vmatpush1.msra.mxu0 0.0
    %920 = vmatprep.subr.mxu0 0.0
    %921 = vmatpush1.msra.mxu0 0.0
    %922 = vmatprep.subr.mxu0 0.0
    %923 = vmatpush1.msra.mxu0 0.0
    %924 = vmatprep.subr.mxu0 0.0
    %925 = vmatpush1.msra.mxu0 0.0
    %926 = vmatprep.subr.mxu0 0.0
    %927 = vmatpush1.msra.mxu0 0.0
    %928 = vmatprep.subr.mxu0 0.0
    %929 = vmatpush1.msra.mxu0 0.0
    %930 = vmatprep.subr.mxu0 0.0
    %931 = vmatpush1.msra.mxu0 0.0
    %932 = vmatprep.mubr.f32.mxu0 0.0
    %v933 = vand.u32 %v696, 4294901760
    %934 = vmatmul.mubr.f32.gmra.mrb[0].mxu0 %v933
    %v935 = vpop.f32.mrb[0].mxu0
    %v936 = vadd.f32 %v785, %v935
    %v937 = vpop.f32.mrb[0].mxu0
    %938 = vdwg.mxu0
    %939 = vmatprep.subr.mxu0 0.0
    %v940 = vand.u32 %v35, 4294901760
    %v941 = vsub.f32 %v35, %v940
    %942 = vmatpush1.msra.mxu0 %v941
    %943 = vmatprep.subr.mxu0 0.0
    %v944 = vand.u32 %v36, 4294901760
    %v945 = vsub.f32 %v36, %v944
    %946 = vmatpush1.msra.mxu0 %v945
    %947 = vmatprep.subr.mxu0 0.0
    %v948 = vand.u32 %v37, 4294901760
    %v949 = vsub.f32 %v37, %v948
    %950 = vmatpush1.msra.mxu0 %v949
    %951 = vmatprep.subr.mxu0 0.0
    %v952 = vand.u32 %v38, 4294901760
    %v953 = vsub.f32 %v38, %v952
    %954 = vmatpush1.msra.mxu0 %v953
    %955 = vmatprep.subr.mxu0 0.0
    %v956 = vand.u32 %v39, 4294901760
    %v957 = vsub.f32 %v39, %v956
    %958 = vmatpush1.msra.mxu0 %v957
    %959 = vmatprep.subr.mxu0 0.0
    %v960 = vand.u32 %v40, 4294901760
    %v961 = vsub.f32 %v40, %v960
    %962 = vmatpush1.msra.mxu0 %v961
    %963 = vmatprep.subr.mxu0 0.0
    %v964 = vand.u32 %v41, 4294901760
    %v965 = vsub.f32 %v41, %v964
    %966 = vmatpush1.msra.mxu0 %v965
    %967 = vmatprep.subr.mxu0 0.0
    %v968 = vand.u32 %v42, 4294901760
    %v969 = vsub.f32 %v42, %v968
    %970 = vmatpush1.msra.mxu0 %v969
    %971 = vmatprep.subr.mxu0 0.0
    %v972 = vand.u32 %v43, 4294901760
    %v973 = vsub.f32 %v43, %v972
    %974 = vmatpush1.msra.mxu0 %v973
    %975 = vmatprep.subr.mxu0 0.0
    %v976 = vand.u32 %v44, 4294901760
    %v977 = vsub.f32 %v44, %v976
    %978 = vmatpush1.msra.mxu0 %v977
    %979 = vmatprep.subr.mxu0 0.0
    %v980 = vand.u32 %v45, 4294901760
    %v981 = vsub.f32 %v45, %v980
    %982 = vmatpush1.msra.mxu0 %v981
    %983 = vmatprep.subr.mxu0 0.0
    %v984 = vand.u32 %v46, 4294901760
    %v985 = vsub.f32 %v46, %v984
    %986 = vmatpush1.msra.mxu0 %v985
    %987 = vmatprep.subr.mxu0 0.0
    %v988 = vand.u32 %v47, 4294901760
    %v989 = vsub.f32 %v47, %v988
    %990 = vmatpush1.msra.mxu0 %v989
    %991 = vmatprep.subr.mxu0 0.0
    %v992 = vand.u32 %v48, 4294901760
    %v993 = vsub.f32 %v48, %v992
    %994 = vmatpush1.msra.mxu0 %v993
    %995 = vmatprep.subr.mxu0 0.0
    %v996 = vand.u32 %v49, 4294901760
    %v997 = vsub.f32 %v49, %v996
    %998 = vmatpush1.msra.mxu0 %v997
    %999 = vmatprep.subr.mxu0 0.0
    %v1000 = vand.u32 %v50, 4294901760
    %v1001 = vsub.f32 %v50, %v1000
    %1002 = vmatpush1.msra.mxu0 %v1001
    %1003 = vmatprep.subr.mxu0 0.0
    %1004 = vmatpush1.msra.mxu0 0.0
    %1005 = vmatprep.subr.mxu0 0.0
    %1006 = vmatpush1.msra.mxu0 0.0
    %1007 = vmatprep.subr.mxu0 0.0
    %1008 = vmatpush1.msra.mxu0 0.0
    %1009 = vmatprep.subr.mxu0 0.0
    %1010 = vmatpush1.msra.mxu0 0.0
    %1011 = vmatprep.subr.mxu0 0.0
    %1012 = vmatpush1.msra.mxu0 0.0
    %1013 = vmatprep.subr.mxu0 0.0
    %1014 = vmatpush1.msra.mxu0 0.0
    %1015 = vmatprep.subr.mxu0 0.0
    %1016 = vmatpush1.msra.mxu0 0.0
    %1017 = vmatprep.subr.mxu0 0.0
    %1018 = vmatpush1.msra.mxu0 0.0
    %1019 = vmatprep.subr.mxu0 0.0
    %1020 = vmatpush1.msra.mxu0 0.0
    %1021 = vmatprep.subr.mxu0 0.0
    %1022 = vmatpush1.msra.mxu0 0.0
    %1023 = vmatprep.subr.mxu0 0.0
    %1024 = vmatpush1.msra.mxu0 0.0
    %1025 = vmatprep.subr.mxu0 0.0
    %1026 = vmatpush1.msra.mxu0 0.0
    %1027 = vmatprep.subr.mxu0 0.0
    %1028 = vmatpush1.msra.mxu0 0.0
    %1029 = vmatprep.subr.mxu0 0.0
    %1030 = vmatpush1.msra.mxu0 0.0
    %1031 = vmatprep.subr.mxu0 0.0
    %1032 = vmatpush1.msra.mxu0 0.0
    %1033 = vmatprep.subr.mxu0 0.0
    %1034 = vmatpush1.msra.mxu0 0.0
    %1035 = vmatprep.mubr.f32.mxu0 0.0
    %v1036 = vand.u32 %v696, 4294901760
    %v1037 = vsub.f32 %v696, %v1036
    %1038 = vmatmul.mubr.f32.gmra.mrb[0].mxu0 %v1037
    %v1039 = vpop.f32.mrb[0].mxu0
    %v1040 = vadd.f32 %v936, %v1039
    %v1041 = vpop.f32.mrb[0].mxu0
    %1042 = vdwg.mxu0
    %1043 = vmatprep.subr.mxu0 0.0
    %v1044 = vand.u32 %v35, 4294901760
    %1045 = vmatpush1.msra.mxu0 %v1044
    %1046 = vmatprep.subr.mxu0 0.0
    %v1047 = vand.u32 %v36, 4294901760
    %1048 = vmatpush1.msra.mxu0 %v1047
    %1049 = vmatprep.subr.mxu0 0.0
    %v1050 = vand.u32 %v37, 4294901760
    %1051 = vmatpush1.msra.mxu0 %v1050
    %1052 = vmatprep.subr.mxu0 0.0
    %v1053 = vand.u32 %v38, 4294901760
    %1054 = vmatpush1.msra.mxu0 %v1053
    %1055 = vmatprep.subr.mxu0 0.0
    %v1056 = vand.u32 %v39, 4294901760
    %1057 = vmatpush1.msra.mxu0 %v1056
    %1058 = vmatprep.subr.mxu0 0.0
    %v1059 = vand.u32 %v40, 4294901760
    %1060 = vmatpush1.msra.mxu0 %v1059
    %1061 = vmatprep.subr.mxu0 0.0
    %v1062 = vand.u32 %v41, 4294901760
    %1063 = vmatpush1.msra.mxu0 %v1062
    %1064 = vmatprep.subr.mxu0 0.0
    %v1065 = vand.u32 %v42, 4294901760
    %1066 = vmatpush1.msra.mxu0 %v1065
    %1067 = vmatprep.subr.mxu0 0.0
    %v1068 = vand.u32 %v43, 4294901760
    %1069 = vmatpush1.msra.mxu0 %v1068
    %1070 = vmatprep.subr.mxu0 0.0
    %v1071 = vand.u32 %v44, 4294901760
    %1072 = vmatpush1.msra.mxu0 %v1071
    %1073 = vmatprep.subr.mxu0 0.0
    %v1074 = vand.u32 %v45, 4294901760
    %1075 = vmatpush1.msra.mxu0 %v1074
    %1076 = vmatprep.subr.mxu0 0.0
    %v1077 = vand.u32 %v46, 4294901760
    %1078 = vmatpush1.msra.mxu0 %v1077
    %1079 = vmatprep.subr.mxu0 0.0
    %v1080 = vand.u32 %v47, 4294901760
    %1081 = vmatpush1.msra.mxu0 %v1080
    %1082 = vmatprep.subr.mxu0 0.0
    %v1083 = vand.u32 %v48, 4294901760
    %1084 = vmatpush1.msra.mxu0 %v1083
    %1085 = vmatprep.subr.mxu0 0.0
    %v1086 = vand.u32 %v49, 4294901760
    %1087 = vmatpush1.msra.mxu0 %v1086
    %1088 = vmatprep.subr.mxu0 0.0
    %v1089 = vand.u32 %v50, 4294901760
    %1090 = vmatpush1.msra.mxu0 %v1089
    %1091 = vmatprep.subr.mxu0 0.0
    %1092 = vmatpush1.msra.mxu0 0.0
    %1093 = vmatprep.subr.mxu0 0.0
    %1094 = vmatpush1.msra.mxu0 0.0
    %1095 = vmatprep.subr.mxu0 0.0
    %1096 = vmatpush1.msra.mxu0 0.0
    %1097 = vmatprep.subr.mxu0 0.0
    %1098 = vmatpush1.msra.mxu0 0.0
    %1099 = vmatprep.subr.mxu0 0.0
    %1100 = vmatpush1.msra.mxu0 0.0
    %1101 = vmatprep.subr.mxu0 0.0
    %1102 = vmatpush1.msra.mxu0 0.0
    %1103 = vmatprep.subr.mxu0 0.0
    %1104 = vmatpush1.msra.mxu0 0.0
    %1105 = vmatprep.subr.mxu0 0.0
    %1106 = vmatpush1.msra.mxu0 0.0
    %1107 = vmatprep.subr.mxu0 0.0
    %1108 = vmatpush1.msra.mxu0 0.0
    %1109 = vmatprep.subr.mxu0 0.0
    %1110 = vmatpush1.msra.mxu0 0.0
    %1111 = vmatprep.subr.mxu0 0.0
    %1112 = vmatpush1.msra.mxu0 0.0
    %1113 = vmatprep.subr.mxu0 0.0
    %1114 = vmatpush1.msra.mxu0 0.0
    %1115 = vmatprep.subr.mxu0 0.0
    %1116 = vmatpush1.msra.mxu0 0.0
    %1117 = vmatprep.subr.mxu0 0.0
    %1118 = vmatpush1.msra.mxu0 0.0
    %1119 = vmatprep.subr.mxu0 0.0
    %1120 = vmatpush1.msra.mxu0 0.0
    %1121 = vmatprep.subr.mxu0 0.0
    %1122 = vmatpush1.msra.mxu0 0.0
    %1123 = vmatprep.mubr.f32.mxu0 0.0
    %v1124 = vand.u32 %v696, 4294901760
    %v1125 = vsub.f32 %v696, %v1124
    %v1126 = vand.u32 %v1125, 4294901760
    %1127 = vmatmul.mubr.f32.gmra.mrb[0].mxu0 %v1126
    %v1128 = vpop.f32.mrb[0].mxu0
    %v1129 = vadd.f32 %v1040, %v1128
    %v1130 = vpop.f32.mrb[0].mxu0
    %1131 = vdwg.mxu0
    %1132 = vmatprep.subr.mxu0 0.0
    %v1133 = vand.u32 %v35, 4294901760
    %v1134 = vsub.f32 %v35, %v1133
    %v1135 = vand.u32 %v1134, 4294901760
    %1136 = vmatpush1.msra.mxu0 %v1135
    %1137 = vmatprep.subr.mxu0 0.0
    %v1138 = vand.u32 %v36, 4294901760
    %v1139 = vsub.f32 %v36, %v1138
    %v1140 = vand.u32 %v1139, 4294901760
    %1141 = vmatpush1.msra.mxu0 %v1140
    %1142 = vmatprep.subr.mxu0 0.0
    %v1143 = vand.u32 %v37, 4294901760
    %v1144 = vsub.f32 %v37, %v1143
    %v1145 = vand.u32 %v1144, 4294901760
    %1146 = vmatpush1.msra.mxu0 %v1145
    %1147 = vmatprep.subr.mxu0 0.0
    %v1148 = vand.u32 %v38, 4294901760
    %v1149 = vsub.f32 %v38, %v1148
    %v1150 = vand.u32 %v1149, 4294901760
    %1151 = vmatpush1.msra.mxu0 %v1150
    %1152 = vmatprep.subr.mxu0 0.0
    %v1153 = vand.u32 %v39, 4294901760
    %v1154 = vsub.f32 %v39, %v1153
    %v1155 = vand.u32 %v1154, 4294901760
    %1156 = vmatpush1.msra.mxu0 %v1155
    %1157 = vmatprep.subr.mxu0 0.0
    %v1158 = vand.u32 %v40, 4294901760
    %v1159 = vsub.f32 %v40, %v1158
    %v1160 = vand.u32 %v1159, 4294901760
    %1161 = vmatpush1.msra.mxu0 %v1160
    %1162 = vmatprep.subr.mxu0 0.0
    %v1163 = vand.u32 %v41, 4294901760
    %v1164 = vsub.f32 %v41, %v1163
    %v1165 = vand.u32 %v1164, 4294901760
    %1166 = vmatpush1.msra.mxu0 %v1165
    %1167 = vmatprep.subr.mxu0 0.0
    %v1168 = vand.u32 %v42, 4294901760
    %v1169 = vsub.f32 %v42, %v1168
    %v1170 = vand.u32 %v1169, 4294901760
    %1171 = vmatpush1.msra.mxu0 %v1170
    %1172 = vmatprep.subr.mxu0 0.0
    %v1173 = vand.u32 %v43, 4294901760
    %v1174 = vsub.f32 %v43, %v1173
    %v1175 = vand.u32 %v1174, 4294901760
    %1176 = vmatpush1.msra.mxu0 %v1175
    %1177 = vmatprep.subr.mxu0 0.0
    %v1178 = vand.u32 %v44, 4294901760
    %v1179 = vsub.f32 %v44, %v1178
    %v1180 = vand.u32 %v1179, 4294901760
    %1181 = vmatpush1.msra.mxu0 %v1180
    %1182 = vmatprep.subr.mxu0 0.0
    %v1183 = vand.u32 %v45, 4294901760
    %v1184 = vsub.f32 %v45, %v1183
    %v1185 = vand.u32 %v1184, 4294901760
    %1186 = vmatpush1.msra.mxu0 %v1185
    %1187 = vmatprep.subr.mxu0 0.0
    %v1188 = vand.u32 %v46, 4294901760
    %v1189 = vsub.f32 %v46, %v1188
    %v1190 = vand.u32 %v1189, 4294901760
    %1191 = vmatpush1.msra.mxu0 %v1190
    %1192 = vmatprep.subr.mxu0 0.0
    %v1193 = vand.u32 %v47, 4294901760
    %v1194 = vsub.f32 %v47, %v1193
    %v1195 = vand.u32 %v1194, 4294901760
    %1196 = vmatpush1.msra.mxu0 %v1195
    %1197 = vmatprep.subr.mxu0 0.0
    %v1198 = vand.u32 %v48, 4294901760
    %v1199 = vsub.f32 %v48, %v1198
    %v1200 = vand.u32 %v1199, 4294901760
    %1201 = vmatpush1.msra.mxu0 %v1200
    %1202 = vmatprep.subr.mxu0 0.0
    %v1203 = vand.u32 %v49, 4294901760
    %v1204 = vsub.f32 %v49, %v1203
    %v1205 = vand.u32 %v1204, 4294901760
    %1206 = vmatpush1.msra.mxu0 %v1205
    %1207 = vmatprep.subr.mxu0 0.0
    %v1208 = vand.u32 %v50, 4294901760
    %v1209 = vsub.f32 %v50, %v1208
    %v1210 = vand.u32 %v1209, 4294901760
    %1211 = vmatpush1.msra.mxu0 %v1210
    %1212 = vmatprep.subr.mxu0 0.0
    %1213 = vmatpush1.msra.mxu0 0.0
    %1214 = vmatprep.subr.mxu0 0.0
    %1215 = vmatpush1.msra.mxu0 0.0
    %1216 = vmatprep.subr.mxu0 0.0
    %1217 = vmatpush1.msra.mxu0 0.0
    %1218 = vmatprep.subr.mxu0 0.0
    %1219 = vmatpush1.msra.mxu0 0.0
    %1220 = vmatprep.subr.mxu0 0.0
    %1221 = vmatpush1.msra.mxu0 0.0
    %1222 = vmatprep.subr.mxu0 0.0
    %1223 = vmatpush1.msra.mxu0 0.0
    %1224 = vmatprep.subr.mxu0 0.0
    %1225 = vmatpush1.msra.mxu0 0.0
    %1226 = vmatprep.subr.mxu0 0.0
    %1227 = vmatpush1.msra.mxu0 0.0
    %1228 = vmatprep.subr.mxu0 0.0
    %1229 = vmatpush1.msra.mxu0 0.0
    %1230 = vmatprep.subr.mxu0 0.0
    %1231 = vmatpush1.msra.mxu0 0.0
    %1232 = vmatprep.subr.mxu0 0.0
    %1233 = vmatpush1.msra.mxu0 0.0
    %1234 = vmatprep.subr.mxu0 0.0
    %1235 = vmatpush1.msra.mxu0 0.0
    %1236 = vmatprep.subr.mxu0 0.0
    %1237 = vmatpush1.msra.mxu0 0.0
    %1238 = vmatprep.subr.mxu0 0.0
    %1239 = vmatpush1.msra.mxu0 0.0
    %1240 = vmatprep.subr.mxu0 0.0
    %1241 = vmatpush1.msra.mxu0 0.0
    %1242 = vmatprep.subr.mxu0 0.0
    %1243 = vmatpush1.msra.mxu0 0.0
    %1244 = vmatprep.mubr.f32.mxu0 0.0
    %v1245 = vand.u32 %v696, 4294901760
    %1246 = vmatmul.mubr.f32.gmra.mrb[0].mxu0 %v1245
    %v1247 = vpop.f32.mrb[0].mxu0
    %v1248 = vadd.f32 %v1129, %v1247
    %v1249 = vpop.f32.mrb[0].mxu0
    %1250 = vdwg.mxu0
    %1251 = vmatprep.subr.mxu0 0.0
    %v1252 = vand.u32 %v35, 4294901760
    %1253 = vmatpush1.msra.mxu0 %v1252
    %1254 = vmatprep.subr.mxu0 0.0
    %v1255 = vand.u32 %v36, 4294901760
    %1256 = vmatpush1.msra.mxu0 %v1255
    %1257 = vmatprep.subr.mxu0 0.0
    %v1258 = vand.u32 %v37, 4294901760
    %1259 = vmatpush1.msra.mxu0 %v1258
    %1260 = vmatprep.subr.mxu0 0.0
    %v1261 = vand.u32 %v38, 4294901760
    %1262 = vmatpush1.msra.mxu0 %v1261
    %1263 = vmatprep.subr.mxu0 0.0
    %v1264 = vand.u32 %v39, 4294901760
    %1265 = vmatpush1.msra.mxu0 %v1264
    %1266 = vmatprep.subr.mxu0 0.0
    %v1267 = vand.u32 %v40, 4294901760
    %1268 = vmatpush1.msra.mxu0 %v1267
    %1269 = vmatprep.subr.mxu0 0.0
    %v1270 = vand.u32 %v41, 4294901760
    %1271 = vmatpush1.msra.mxu0 %v1270
    %1272 = vmatprep.subr.mxu0 0.0
    %v1273 = vand.u32 %v42, 4294901760
    %1274 = vmatpush1.msra.mxu0 %v1273
    %1275 = vmatprep.subr.mxu0 0.0
    %v1276 = vand.u32 %v43, 4294901760
    %1277 = vmatpush1.msra.mxu0 %v1276
    %1278 = vmatprep.subr.mxu0 0.0
    %v1279 = vand.u32 %v44, 4294901760
    %1280 = vmatpush1.msra.mxu0 %v1279
    %1281 = vmatprep.subr.mxu0 0.0
    %v1282 = vand.u32 %v45, 4294901760
    %1283 = vmatpush1.msra.mxu0 %v1282
    %1284 = vmatprep.subr.mxu0 0.0
    %v1285 = vand.u32 %v46, 4294901760
    %1286 = vmatpush1.msra.mxu0 %v1285
    %1287 = vmatprep.subr.mxu0 0.0
    %v1288 = vand.u32 %v47, 4294901760
    %1289 = vmatpush1.msra.mxu0 %v1288
    %1290 = vmatprep.subr.mxu0 0.0
    %v1291 = vand.u32 %v48, 4294901760
    %1292 = vmatpush1.msra.mxu0 %v1291
    %1293 = vmatprep.subr.mxu0 0.0
    %v1294 = vand.u32 %v49, 4294901760
    %1295 = vmatpush1.msra.mxu0 %v1294
    %1296 = vmatprep.subr.mxu0 0.0
    %v1297 = vand.u32 %v50, 4294901760
    %1298 = vmatpush1.msra.mxu0 %v1297
    %1299 = vmatprep.subr.mxu0 0.0
    %1300 = vmatpush1.msra.mxu0 0.0
    %1301 = vmatprep.subr.mxu0 0.0
    %1302 = vmatpush1.msra.mxu0 0.0
    %1303 = vmatprep.subr.mxu0 0.0
    %1304 = vmatpush1.msra.mxu0 0.0
    %1305 = vmatprep.subr.mxu0 0.0
    %1306 = vmatpush1.msra.mxu0 0.0
    %1307 = vmatprep.subr.mxu0 0.0
    %1308 = vmatpush1.msra.mxu0 0.0
    %1309 = vmatprep.subr.mxu0 0.0
    %1310 = vmatpush1.msra.mxu0 0.0
    %1311 = vmatprep.subr.mxu0 0.0
    %1312 = vmatpush1.msra.mxu0 0.0
    %1313 = vmatprep.subr.mxu0 0.0
    %1314 = vmatpush1.msra.mxu0 0.0
    %1315 = vmatprep.subr.mxu0 0.0
    %1316 = vmatpush1.msra.mxu0 0.0
    %1317 = vmatprep.subr.mxu0 0.0
    %1318 = vmatpush1.msra.mxu0 0.0
    %1319 = vmatprep.subr.mxu0 0.0
    %1320 = vmatpush1.msra.mxu0 0.0
    %1321 = vmatprep.subr.mxu0 0.0
    %1322 = vmatpush1.msra.mxu0 0.0
    %1323 = vmatprep.subr.mxu0 0.0
    %1324 = vmatpush1.msra.mxu0 0.0
    %1325 = vmatprep.subr.mxu0 0.0
    %1326 = vmatpush1.msra.mxu0 0.0
    %1327 = vmatprep.subr.mxu0 0.0
    %1328 = vmatpush1.msra.mxu0 0.0
    %1329 = vmatprep.subr.mxu0 0.0
    %1330 = vmatpush1.msra.mxu0 0.0
    %1331 = vmatprep.mubr.f32.mxu0 0.0
    %v1332 = vand.u32 %v696, 4294901760
    %1333 = vmatmul.mubr.f32.gmra.mrb[0].mxu0 %v1332
    %v1334 = vpop.f32.mrb[0].mxu0
    %v1335 = vadd.f32 %v1248, %v1334
    %v1336 = vpop.f32.mrb[0].mxu0
    %1337 = vdwg.mxu0
    %v1338 = vmul.f32 %v1335, 0.032258064
    %v1339 = vmax.f32 %v1338, 0.0
    %v1340 = vrsqrt.pop %v1339
    %v1341 = vmul.f32 %v1339, %v1340
    %vm1342 = vcmp.eq.f32.partialorder %v1339, inf
    %v1343 = vsel %vm1342, %v1339, %v1341
    %vm1344 = vcmp.eq.f32.partialorder %v1339, 0.0
    %v1345 = vand.u32 %v1339, 2147483648
    %v1346 = vsel %vm1344, %v1345, %v1343
    %v1347 = vadd.f32 %v1346, 1e-06
    %v1348 = vrcp.pop %v1347
    %v1349 = vmul.f32 %v1347, %v1348
    %v1350 = vsub.f32 2.0, %v1349
    %v1351 = vmul.f32 %v1348, %v1350
    %v1352 = vstv %s51
    %v1353 = vmul.f32 %v1352, %v1351
    %v1354 = vmul.f32 %v695, %v1353
    %v1355 = vstv %s52
    %v1356 = vadd.f32 %v1354, %v1355
    %1357 = vst [vmem:[#allocation7] sm:$0xf] %v1356
    // Predicated region
    $region22: #{tpu_custom_call.1} parent=1 // pred_check
      _
    $region23: #{tpu_custom_call.1} parent=1 // pred_check_branch
      %1359 = sbr.rel (0) target = $region25
    $region24: #{tpu_custom_call.1} parent=1 // pred_region
      %s1361 = ssub.s32 64, 64
      %1362 = vsyncadd [#allocation6], %s1361
      %s1364 = sshll.u32 [#allocation7], 4
      %s1365 = int_to_ptr.vmem [resolvable:$true] %s1364
      %1367 = dma.vmem_to_hbm [thread:$0]  %s1365, 64, %s4, [#allocation6]
    $region25: #{tpu_custom_call.1} parent=1 // pred_fallthru
      _
    // Predicated region
    $region26: #{tpu_custom_call.1} parent=1 // pred_check
      _
    $region27: #{tpu_custom_call.1} parent=1 // pred_check_branch
      %1369 = sbr.rel (0) target = $region29
    $region28: #{tpu_custom_call.1} parent=1 // pred_region
      %1370 = dma.done [#allocation6], 64
    $region29: #{tpu_custom_call.1} parent=1 // pred_fallthru
      _
    %1371 = vsyncpa [#allocation5], 1
    %1372 = vsyncpa [#allocation6], 1

</llo_original>
